<compile_context>
chip_gen: v7x
topology: tpu7x:2x2x1
jax: 0.10.0
libtpu: 0.0.40
codegen_flags: <defaults>
</compile_context>

<pallas_src>
import math
import numpy as np
import jax
import jax.numpy as jnp
from jax.experimental import pallas as pl
from jax.experimental.pallas import tpu as pltpu


def _round_up(x, m):
    return ((x + m - 1) // m) * m


def mpnn_kernel(sizes_ref, a_ref, v0_ref, w_ref, b_ref, mol_ref, v_scratch):
    """Grid = (molecule, layer).  One step = one MPNN layer for one molecule.

      h      = relu(v @ W_l + b_l)      (bf16 MXU operands, f32 accumulation)
      v     <- h + A_m @ h              (A_m = molecule-m diagonal adjacency)
      last layer: mol[m] = masked sum over the real node rows of v

    Running node features for the current molecule live in a f32 VMEM scratch
    accumulator across the sequential ("arbitrary") layer axis; the molecule
    axis is "parallel" so both v7x TensorCores are used.
    """
    m = pl.program_id(0)
    l = pl.program_id(1)

    @pl.when(l == 0)
    def _():
        v_scratch[...] = v0_ref[...]

    v = v_scratch[...]
    # nn.Linear: w_ref holds the right-multiplying matrix (i.e. torch W^T);
    # kernel and reference use the same convention, so no transpose here.
    # bf16 operands (fast MXU path), f32 accumulation, bias added in f32.
    h = jnp.dot(v.astype(jnp.bfloat16), w_ref[...],
                preferred_element_type=jnp.float32)
    h = jnp.maximum(h + b_ref[pl.ds(l, 1), :], 0.0)            # relu (f32)
    # Message passing: A is an exact 0/1 matrix stored in bf16.
    v_new = h + jnp.dot(a_ref[...], h.astype(jnp.bfloat16),
                        preferred_element_type=jnp.float32)
    v_scratch[...] = v_new

    @pl.when(l == pl.num_programs(1) - 1)
    def _():
        # Fused sum-pool over this molecule's real nodes.  Padded tail rows
        # carry relu(bias) values (they never leak into real rows because the
        # corresponding A columns are zero) so they are masked out here using
        # the scalar-prefetched molecular size.
        n_real = sizes_ref[m]
        row = jax.lax.broadcasted_iota(jnp.int32, v_new.shape, 0)
        pooled = jnp.sum(jnp.where(row < n_real, v_new, 0.0),
                         axis=0, keepdims=True)                 # (1, d_pad)
        mol_ref[...] = jnp.broadcast_to(pooled, mol_ref.shape)  # (8, d_pad)


def _mpnn_pallas_call(sizes, a_blocks, v0_blocks, w_p, b_p):
    n_mol, t_pad, _ = a_blocks.shape
    n_layers, d_pad, _ = w_p.shape

    # Per-generation VMEM budgeting: actual (double-buffered) block bytes +
    # scratch + headroom, capped safely below v7x's 64 MiB physical VMEM.
    blk_bytes = (t_pad * t_pad * 2          # A_m          (bf16)
                 + t_pad * d_pad * 4        # v0_m         (f32)
                 + d_pad * d_pad * 2        # W_l          (bf16)
                 + n_layers * d_pad * 4     # bias stack   (f32)
                 + 8 * d_pad * 4)           # out block    (f32)
    vmem_need = 2 * blk_bytes + t_pad * d_pad * 4   # double buffers + scratch
    vmem_limit = min(vmem_need + (8 << 20), 48 << 20)

    return pl.pallas_call(
        mpnn_kernel,
        out_shape=jax.ShapeDtypeStruct((n_mol, 8, d_pad), jnp.float32),
        grid_spec=pltpu.PrefetchScalarGridSpec(
            num_scalar_prefetch=1,                  # molecular sizes -> SMEM
            grid=(n_mol, n_layers),
            in_specs=[
                # Diagonal adjacency block of molecule m only (block-diag A).
                pl.BlockSpec((None, t_pad, t_pad), lambda m, l, sz: (m, 0, 0)),
                # Initial node features of molecule m.
                pl.BlockSpec((None, t_pad, d_pad), lambda m, l, sz: (m, 0, 0)),
                # Per-layer weight matrix (bf16), streamed per layer step.
                pl.BlockSpec((None, d_pad, d_pad), lambda m, l, sz: (l, 0, 0)),
                # Whole bias stack loaded once (constant block index, tiny).
                pl.BlockSpec((n_layers, d_pad), lambda m, l, sz: (0, 0)),
            ],
            out_specs=pl.BlockSpec((None, 8, d_pad), lambda m, l, sz: (m, 0, 0)),
            scratch_shapes=[pltpu.VMEM((t_pad, d_pad), jnp.float32)],
        ),
        compiler_params=pltpu.CompilerParams(
            dimension_semantics=("parallel", "arbitrary"),
            vmem_limit_bytes=vmem_limit),
    )(sizes, a_blocks, v0_blocks, w_p, b_p)


_mpnn_pallas_call_jit = jax.jit(_mpnn_pallas_call)


def mgnn_forward(embed_table, w_stack, b_stack, fingerprints, adjacencies,
                 molecular_sizes):
    """Forward pass == the torch module.

    fingerprints:    list of per-molecule int fingerprint-id vectors
    adjacencies:     list of per-molecule (s_m, s_m) 0/1 adjacency matrices
    molecular_sizes: list of ints (node counts per molecule)
    """
    dim = embed_table.shape[1]
    n_layers = w_stack.shape[0]
    n_mol = len(molecular_sizes)

    # Padding is exact: padded node rows/cols of A are zero, padded feature
    # cols of W/b are zero (so they stay zero through relu/matmuls), padded v0
    # rows are zero, and the in-kernel pool masks padded node rows.
    d_pad = _round_up(dim, 128)                    # lane-dense, unmasked vst
    t_pad = _round_up(max(molecular_sizes), 128)   # lane-dense A, full K tiles

    # --- host glue: cat + embedding gather + per-molecule block padding -----
    fp = jnp.concatenate([jnp.asarray(f, jnp.int32) for f in fingerprints])
    v_nodes = jnp.take(embed_table, fp, axis=0).astype(jnp.float32)

    v0 = jnp.zeros((n_mol, t_pad, d_pad), jnp.float32)
    a = jnp.zeros((n_mol, t_pad, t_pad), jnp.float32)
    off = 0
    for mi, s in enumerate(molecular_sizes):
        v0 = v0.at[mi, :s, :dim].set(v_nodes[off:off + s])
        a = a.at[mi, :s, :s].set(jnp.asarray(adjacencies[mi], jnp.float32))
        off += s
    a = a.astype(jnp.bfloat16)                     # 0/1 adjacency: exact bf16

    w_p = jnp.zeros((n_layers, d_pad, d_pad), jnp.bfloat16)
    w_p = w_p.at[:, :dim, :dim].set(w_stack.astype(jnp.bfloat16))
    b_p = jnp.zeros((n_layers, d_pad), jnp.float32)
    b_p = b_p.at[:, :dim].set(b_stack.astype(jnp.float32))

    sizes = jnp.asarray(molecular_sizes, jnp.int32)

    mol = _mpnn_pallas_call_jit(sizes, a, v0, w_p, b_p)   # (n_mol, 8, d_pad)
    return mol[:, 0, :dim]


def reference_forward(embed_table, w_stack, b_stack, fingerprints, adjacencies,
                      sizes):
    """Pure-JAX f32 reference mirroring the torch module exactly."""
    fp = jnp.concatenate([jnp.asarray(f, jnp.int32) for f in fingerprints])
    n = int(fp.shape[0])
    adj = jnp.zeros((n, n), jnp.float32)
    off = 0
    for am, s in zip(adjacencies, sizes):
        adj = adj.at[off:off + s, off:off + s].set(jnp.asarray(am, jnp.float32))
        off += s
    v = embed_table[fp]
    for l in range(w_stack.shape[0]):
        h = jax.nn.relu(v @ w_stack[l] + b_stack[l])
        v = h + adj @ h
    outs, off = [], 0
    for s in sizes:
        outs.append(v[off:off + s].sum(0))
        off += s
    return jnp.stack(outs)


if __name__ == "__main__":
    # Small, deterministic synthetic problem.
    N_fingerprint = 50
    dim = 32
    layer_hidden = 2
    molecular_sizes = [12, 20]        # two molecules, 32 nodes total
    n_mol = len(molecular_sizes)

    key = jax.random.PRNGKey(0)
    k_embed, k_w, k_b, k_fp, k_adj = jax.random.split(key, 5)

    # nn.Embedding default init ~ N(0, 1)
    embed_table = jax.random.normal(k_embed, (N_fingerprint, dim), jnp.float32)

    # nn.Linear(dim, dim): weight/bias ~ U(-1/sqrt(dim), 1/sqrt(dim)).
    # w_stack is the right-multiplying matrix (plays the role of torch's W^T),
    # used identically by kernel and reference.
    bound = 1.0 / math.sqrt(dim)
    w_stack = jax.random.uniform(k_w, (layer_hidden, dim, dim), jnp.float32,
                                 -bound, bound)
    b_stack = jax.random.uniform(k_b, (layer_hidden, dim), jnp.float32,
                                 -bound, bound)

    # Per-molecule fingerprint id vectors (torch.cat happens in the wrapper).
    fp_keys = jax.random.split(k_fp, n_mol)
    fingerprints = [jax.random.randint(kk, (s,), 0, N_fingerprint,
                                       dtype=jnp.int32)
                    for kk, s in zip(fp_keys, molecular_sizes)]

    # Per-molecule adjacency matrices (self.pad builds the block-diag matrix).
    adj_keys = jax.random.split(k_adj, n_mol)
    adjacencies = []
    for kk, s in zip(adj_keys, molecular_sizes):
        aa = (jax.random.uniform(kk, (s, s)) < 0.3).astype(jnp.float32)
        aa = jnp.triu(aa, 1)
        adjacencies.append(aa + aa.T)             # symmetric, no self loops

    out = mgnn_forward(embed_table, w_stack, b_stack, fingerprints,
                       adjacencies, molecular_sizes)
    out = jax.block_until_ready(out)

    ref = reference_forward(embed_table, w_stack, b_stack, fingerprints,
                            adjacencies, molecular_sizes)
    # Tolerance accounts for the deliberate bf16 operand rounding of both MXU
    # matmuls (A is exact 0/1 in bf16; accumulation and bias stay in f32).
    np.testing.assert_allclose(np.asarray(out), np.asarray(ref),
                               rtol=5e-2, atol=2e-1)

    print("KERNEL_OK")
</pallas_src>

<mosaic_0001>
module attributes {stable_mosaic.version = 11 : i64} {
  func.func @mpnn_kernel(%arg0: i32, %arg1: i32, %arg2: memref<2xi32, #tpu.memory_space<smem>>, %arg3: memref<1x128x128xbf16, #tpu.memory_space<vmem>>, %arg4: memref<1x128x128xf32, #tpu.memory_space<vmem>>, %arg5: memref<1x128x128xbf16, #tpu.memory_space<vmem>>, %arg6: memref<2x128xf32, #tpu.memory_space<vmem>>, %arg7: memref<1x8x128xf32, #tpu.memory_space<vmem>>, %arg8: memref<128x128xf32, #tpu.memory_space<vmem>>) attributes {dimension_semantics = [#tpu.dimension_semantics<parallel>, #tpu.dimension_semantics<arbitrary>], iteration_bounds = array<i64: 2, 2>, scalar_prefetch = 1 : i64, scratch_operands = 1 : i64, tpu.core_type = #tpu.core_type<tc>, window_params = [{transform_indices = @transform_0, window_bounds = array<i64: 1, 128, 128>}, {transform_indices = @transform_1, window_bounds = array<i64: 1, 128, 128>}, {transform_indices = @transform_2, window_bounds = array<i64: 1, 128, 128>}, {pipeline_mode = #tpu.pipeline_mode<synchronous>, transform_indices = @transform_3, window_bounds = array<i64: 2, 128>}, {transform_indices = @transform_4, window_bounds = array<i64: 1, 8, 128>}]} {
    %c0_i32 = arith.constant 0 : i32
    %0 = arith.cmpi eq, %arg1, %c0_i32 : i32
    %1 = arith.extui %0 : i1 to i32
    %c0_i32_0 = arith.constant 0 : i32
    %2 = arith.cmpi ne, %1, %c0_i32_0 : i32
    scf.if %2 {
      %c0_14 = arith.constant 0 : index
      %c0_15 = arith.constant 0 : index
      %c0_16 = arith.constant 0 : index
      %23 = vector.load %arg4[%c0_14, %c0_15, %c0_16] : memref<1x128x128xf32, #tpu.memory_space<vmem>>, vector<1x128x128xf32>
      %24 = vector.shape_cast %23 : vector<1x128x128xf32> to vector<128x128xf32>
      %c0_17 = arith.constant 0 : index
      %c0_18 = arith.constant 0 : index
      %25 = vector.load %arg8[%c0_17, %c0_18] : memref<128x128xf32, #tpu.memory_space<vmem>>, vector<128x128xf32>
      tpu.vector_store %arg8[%c0_17, %c0_18], %24 {strides = array<i32>} : memref<128x128xf32, #tpu.memory_space<vmem>>, vector<128x128xf32>,
    } else {
    }
    %c0 = arith.constant 0 : index
    %c0_1 = arith.constant 0 : index
    %3 = vector.load %arg8[%c0, %c0_1] : memref<128x128xf32, #tpu.memory_space<vmem>>, vector<128x128xf32>
    %4 = arith.truncf %3 : vector<128x128xf32> to vector<128x128xbf16>
    %c0_2 = arith.constant 0 : index
    %c0_3 = arith.constant 0 : index
    %c0_4 = arith.constant 0 : index
    %5 = vector.load %arg5[%c0_2, %c0_3, %c0_4] : memref<1x128x128xbf16, #tpu.memory_space<vmem>>, vector<1x128x128xbf16>
    %6 = vector.shape_cast %5 : vector<1x128x128xbf16> to vector<128x128xbf16>
    %cst = arith.constant dense<0.000000e+00> : vector<128x128xf32>
    %7 = tpu.matmul %4, %6, %cst {dimension_numbers = #tpu.dot_dimension_numbers<[1], [0], [0], [1], [0, 0, 1, 1], [], []>} : vector<128x128xbf16>, vector<128x128xbf16>, vector<128x128xf32> -> vector<128x128xf32>
    %8 = arith.index_cast %arg1 : i32 to index
    %c0_5 = arith.constant 0 : index
    %9 = vector.load %arg6[%8, %c0_5] : memref<2x128xf32, #tpu.memory_space<vmem>>, vector<1x128xf32>
    %10 = vector.broadcast %9 : vector<1x128xf32> to vector<128x128xf32>
    %11 = arith.addf %7, %10 : vector<128x128xf32>
    %cst_6 = arith.constant 0.000000e+00 : f32
    %12 = vector.broadcast %cst_6 : f32 to vector<128x128xf32>
    %13 = arith.maximumf %11, %12 : vector<128x128xf32>
    %c0_7 = arith.constant 0 : index
    %c0_8 = arith.constant 0 : index
    %c0_9 = arith.constant 0 : index
    %14 = vector.load %arg3[%c0_7, %c0_8, %c0_9] : memref<1x128x128xbf16, #tpu.memory_space<vmem>>, vector<1x128x128xbf16>
    %15 = vector.shape_cast %14 : vector<1x128x128xbf16> to vector<128x128xbf16>
    %16 = arith.truncf %13 : vector<128x128xf32> to vector<128x128xbf16>
    %cst_10 = arith.constant dense<0.000000e+00> : vector<128x128xf32>
    %17 = tpu.matmul %15, %16, %cst_10 {dimension_numbers = #tpu.dot_dimension_numbers<[1], [0], [0], [1], [0, 0, 1, 1], [], []>} : vector<128x128xbf16>, vector<128x128xbf16>, vector<128x128xf32> -> vector<128x128xf32>
    %18 = arith.addf %13, %17 : vector<128x128xf32>
    %c0_11 = arith.constant 0 : index
    %c0_12 = arith.constant 0 : index
    %19 = vector.load %arg8[%c0_11, %c0_12] : memref<128x128xf32, #tpu.memory_space<vmem>>, vector<128x128xf32>
    tpu.vector_store %arg8[%c0_11, %c0_12], %18 {strides = array<i32>} : memref<128x128xf32, #tpu.memory_space<vmem>>, vector<128x128xf32>,
    %c1_i32 = arith.constant 1 : i32
    %20 = arith.cmpi eq, %arg1, %c1_i32 : i32
    %21 = arith.extui %20 : i1 to i32
    %c0_i32_13 = arith.constant 0 : i32
    %22 = arith.cmpi ne, %21, %c0_i32_13 : i32
    scf.if %22 {
      %23 = arith.index_cast %arg0 : i32 to index
      %24 = memref.load %arg2[%23] : memref<2xi32, #tpu.memory_space<smem>>
      %25 = tpu.iota {dimensions = array<i32: 0>} : vector<128x128xi32>
      %26 = vector.broadcast %24 : i32 to vector<128x128xi32>
      %27 = arith.cmpi slt, %25, %26 : vector<128x128xi32>
      %cst_14 = arith.constant 0.000000e+00 : f32
      %28 = vector.broadcast %cst_14 : f32 to vector<128x128xf32>
      %29 = arith.select %27, %18, %28 : vector<128x128xi1>, vector<128x128xf32>
      %cst_15 = arith.constant dense<0.000000e+00> : vector<128xf32>
      %30 = vector.multi_reduction <add>, %29, %cst_15 [0] : vector<128x128xf32> to vector<128xf32>
      %31 = vector.shape_cast %30 : vector<128xf32> to vector<1x128xf32>
      %32 = vector.shape_cast %31 : vector<1x128xf32> to vector<1x128xf32>
      %33 = vector.broadcast %32 : vector<1x128xf32> to vector<8x128xf32>
      %c0_16 = arith.constant 0 : index
      %c0_17 = arith.constant 0 : index
      %c0_18 = arith.constant 0 : index
      %34 = vector.load %arg7[%c0_16, %c0_17, %c0_18] : memref<1x8x128xf32, #tpu.memory_space<vmem>>, vector<1x8x128xf32>
      %35 = vector.shape_cast %34 : vector<1x8x128xf32> to vector<8x128xf32>
      %36 = vector.shape_cast %33 : vector<8x128xf32> to vector<1x8x128xf32>
      tpu.vector_store %arg7[%c0_16, %c0_17, %c0_18], %36 {strides = array<i32>} : memref<1x8x128xf32, #tpu.memory_space<vmem>>, vector<1x8x128xf32>,
    } else {
    }
    return
  }
  func.func @transform_0(%arg0: i32, %arg1: i32, %arg2: memref<2xi32, #tpu.memory_space<smem>>) -> (i32, i32, i32) {
    %c0_i32 = arith.constant 0 : i32
    %c0_i32_0 = arith.constant 0 : i32
    %c0_i32_1 = arith.constant 0 : i32
    return %arg0, %c0_i32, %c0_i32_0 : i32, i32, i32
  }
  func.func @transform_1(%arg0: i32, %arg1: i32, %arg2: memref<2xi32, #tpu.memory_space<smem>>) -> (i32, i32, i32) {
    %c0_i32 = arith.constant 0 : i32
    %c0_i32_0 = arith.constant 0 : i32
    %c0_i32_1 = arith.constant 0 : i32
    return %arg0, %c0_i32, %c0_i32_0 : i32, i32, i32
  }
  func.func @transform_2(%arg0: i32, %arg1: i32, %arg2: memref<2xi32, #tpu.memory_space<smem>>) -> (i32, i32, i32) {
    %c0_i32 = arith.constant 0 : i32
    %c0_i32_0 = arith.constant 0 : i32
    %c0_i32_1 = arith.constant 0 : i32
    return %arg1, %c0_i32, %c0_i32_0 : i32, i32, i32
  }
  func.func @transform_3(%arg0: i32, %arg1: i32, %arg2: memref<2xi32, #tpu.memory_space<smem>>) -> (i32, i32) {
    %c0_i32 = arith.constant 0 : i32
    %c0_i32_0 = arith.constant 0 : i32
    %c0_i32_1 = arith.constant 0 : i32
    return %c0_i32, %c0_i32_0 : i32, i32
  }
  func.func @transform_4(%arg0: i32, %arg1: i32, %arg2: memref<2xi32, #tpu.memory_space<smem>>) -> (i32, i32, i32) {
    %c0_i32 = arith.constant 0 : i32
    %c0_i32_0 = arith.constant 0 : i32
    %c0_i32_1 = arith.constant 0 : i32
    return %arg0, %c0_i32, %c0_i32_0 : i32, i32, i32
  }
}

</mosaic_0001>

<llo_original>
// kernel: _mpnn_pallas_call.1
$region0: #{_mpnn_pallas_call.1}
  #allocation0 [shape = 'u32[]', space=smem, size = 0x4, offset = 0x4, fixed_abs, tag = 'smem constant byte address 0x4 - core index']
  #allocation1 [shape = 'u32[144,128]{1,0:T(1,128)}', space=vmem, size = 0x12000, scoped, tag = 'internal scratch']
  #allocation2 [shape = 'f32[128,128]{1,0:T(8,128)}', space=vmem, size = 0x10000, scoped, tag = 'scratch operand']
  #allocation3 [shape = 's32[1]{0}', space=sflag, size = 0x4, scoped, tag = 'scoped memory for _mpnn_pallas_call.1']
  #allocation4 [shape = 'u8[512]{0}', space=smem, size = 0x200, scoped, tag = 'prefetched SMEM operand 0']
  %s0 = inlined_call_operand.hbm [shape: s32[2], index: 0, kind: input, shape index: {}]
  %s1 = inlined_call_operand.hbm [shape: bf16[2,128,128], index: 1, kind: input, shape index: {}]
  %s2 = inlined_call_operand.hbm [shape: f32[2,128,128], index: 2, kind: input, shape index: {}]
  %s3 = inlined_call_operand.hbm [shape: bf16[2,128,128], index: 3, kind: input, shape index: {}]
  %s4 = inlined_call_operand.vmem [shape: f32[2,128], index: 4, kind: input, shape index: {}]
  %s5 = inlined_call_operand.hbm [shape: f32[2,8,128], index: 5, kind: output, shape index: {}]
  %s6 = sld [smem:[#allocation0]]
  $region69: #{_mpnn_pallas_call.1} parent=0
    _
  %s8 = ssub.s32 1, %s6
  %s9 = scalar_select 0, %s8, %s6
  %11 = dma.hbm_to_smem %s0, 16, [#allocation4], [#allocation3]
  %12 = dma.done [#allocation3], 16
  %13 = sfence
  $region1: #{_mpnn_pallas_call.1} parent=0
    #allocation5 [shape = 'u8[65536]{0}', space=vmem, size = 0x10000, scoped, tag = 'input window, operand 1']
    #allocation6 [shape = 's32[2]{0}', space=sflag, size = 0x8, scoped, tag = 'scoped memory for _mpnn_pallas_call.1']
    #allocation7 [shape = 's32[2]{0}', space=sflag, size = 0x8, scoped, tag = 'scoped memory for _mpnn_pallas_call.1']
    #allocation8 [shape = 'u8[131072]{0}', space=vmem, size = 0x20000, scoped, tag = 'input window, operand 2']
    #allocation9 [shape = 's32[2]{0}', space=sflag, size = 0x8, scoped, tag = 'scoped memory for _mpnn_pallas_call.1']
    #allocation10 [shape = 'u8[65536]{0}', space=vmem, size = 0x10000, scoped, tag = 'input window, operand 3']
    #allocation11 [shape = 'u8[8192]{0}', space=vmem, size = 0x2000, scoped, tag = 'output window, operand 0']
    %14 = vsyncpa [#allocation6], 0
    %s15 = scalar_lea.sflag [#allocation6], 1
    %16 = vsyncpa %s15, 0
    %17 = vsyncpa [#allocation9], 0
    %s18 = scalar_lea.sflag [#allocation9], 1
    %19 = vsyncpa %s18, 0
    %20 = vsyncpa [#allocation7], 0
    %s21 = scalar_lea.sflag [#allocation7], 1
    %22 = vsyncpa %s21, 0
    loop: start=0, step=1, limit=6
    $region2: #{_mpnn_pallas_call.1} parent=1 // loop_pre_header
      _
    $region3: #{_mpnn_pallas_call.1} parent=1 // loop_header
      %s24 = sphi 0, %s28
      %p25 = scmp.ge.s32.totalorder %s24, 6
      %s31 = sphi 0, %s43
      %s32 = sphi 0, %s39
      %s33 = sphi 0, %s31
      %s34 = sphi 0, %s32
      %s35 = sphi 0, %s33
      %s36 = sphi 0, %s34
      %s46 = sphi 0, %s48
      %s49 = sphi 0, %s46
      %s50 = sphi 0, %s49
      %s66 = sphi 0, %s50
      %s72 = sphi 0, %s74
      %s75 = sphi 0, %s72
      %s76 = sphi 0, %s75
      %s92 = sphi 0, %s76
      %s98 = sphi 0, %s100
      %s101 = sphi 0, %s98
      %s102 = sphi 0, %s101
      %s118 = sphi 0, %s102
      %s122 = sphi 0, %s122
      %s124 = sphi 0, %s122
      %s125 = sphi 0, %s124
      %s139 = sphi 0, %s125
      %s145 = sphi 0, %s147
      %s148 = sphi 0, %s145
      %s149 = sphi 0, %s148
      %s165 = sphi 0, %s149
    $region4: #{_mpnn_pallas_call.1} parent=1 // loop_header_branch
      %27 = sbr.rel (%p25) target = $region8
    $region5: #{_mpnn_pallas_call.1} parent=1 // loop_body
      %s29 = ssub.s32 %s24, 1
      %s30 = ssub.s32 %s24, 2
      %s37 = sadd.s32 1, %s32
      %p38 = scmp.ge.s32.totalorder %s37, 2
      %s39 = scalar_select %p38, 0, %s37
      %s40 = sadd.s32 1, %s31
      %s41 = scalar_select %p38, %s40, %s31
      %p42 = scmp.ge.s32.totalorder %s41, 2
      %s43 = scalar_select %p42, 0, %s41
      %s44 = ssub.s32 %s31, %s43
      %p45 = scmp.eq.s32.totalorder %s44, 0
      %s47 = sadd.s32 %s46, 1
      %s48 = scalar_select %p45, %s46, %s47
      %p51 = pneg %p45
      %p52 = scmp.eq.s32.totalorder %s24, 3
      %p53 = por %p51, %p52
      %p54 = scmp.ne.s32.totalorder %s46, %s49
      %p55 = scmp.eq.s32.totalorder %s24, 0
      %p56 = por %p54, %p55
      %p57 = scmp.ne.s32.totalorder %s46, %s49
      %p58 = scmp.eq.s32.totalorder %s29, 3
      %p59 = por %p57, %p58
      %p60 = scmp.ne.s32.totalorder %s49, %s50
      %p61 = scmp.eq.s32.totalorder %s29, 0
      %p62 = por %p60, %p61
      %p63 = scmp.ne.s32.totalorder %s49, %s50
      %p64 = scmp.eq.s32.totalorder %s30, 3
      %p65 = por %p63, %p64
      %p67 = scmp.ne.s32.totalorder %s50, %s66
      %p68 = scmp.eq.s32.totalorder %s30, 0
      %p69 = por %p67, %p68
      %s70 = ssub.s32 %s31, %s43
      %p71 = scmp.eq.s32.totalorder %s70, 0
      %s73 = sadd.s32 %s72, 1
      %s74 = scalar_select %p71, %s72, %s73
      %p77 = pneg %p71
      %p78 = scmp.eq.s32.totalorder %s24, 3
      %p79 = por %p77, %p78
      %p80 = scmp.ne.s32.totalorder %s72, %s75
      %p81 = scmp.eq.s32.totalorder %s24, 0
      %p82 = por %p80, %p81
      %p83 = scmp.ne.s32.totalorder %s72, %s75
      %p84 = scmp.eq.s32.totalorder %s29, 3
      %p85 = por %p83, %p84
      %p86 = scmp.ne.s32.totalorder %s75, %s76
      %p87 = scmp.eq.s32.totalorder %s29, 0
      %p88 = por %p86, %p87
      %p89 = scmp.ne.s32.totalorder %s75, %s76
      %p90 = scmp.eq.s32.totalorder %s30, 3
      %p91 = por %p89, %p90
      %p93 = scmp.ne.s32.totalorder %s76, %s92
      %p94 = scmp.eq.s32.totalorder %s30, 0
      %p95 = por %p93, %p94
      %s96 = ssub.s32 %s32, %s39
      %p97 = scmp.eq.s32.totalorder %s96, 0
      %s99 = sadd.s32 %s98, 1
      %s100 = scalar_select %p97, %s98, %s99
      %p103 = pneg %p97
      %p104 = scmp.eq.s32.totalorder %s24, 3
      %p105 = por %p103, %p104
      %p106 = scmp.ne.s32.totalorder %s98, %s101
      %p107 = scmp.eq.s32.totalorder %s24, 0
      %p108 = por %p106, %p107
      %p109 = scmp.ne.s32.totalorder %s98, %s101
      %p110 = scmp.eq.s32.totalorder %s29, 3
      %p111 = por %p109, %p110
      %p112 = scmp.ne.s32.totalorder %s101, %s102
      %p113 = scmp.eq.s32.totalorder %s29, 0
      %p114 = por %p112, %p113
      %p115 = scmp.ne.s32.totalorder %s101, %s102
      %p116 = scmp.eq.s32.totalorder %s30, 3
      %p117 = por %p115, %p116
      %p119 = scmp.ne.s32.totalorder %s102, %s118
      %p120 = scmp.eq.s32.totalorder %s30, 0
      %p121 = por %p119, %p120
      %s123 = sadd.s32 %s122, 1
      %p126 = scmp.eq.s32.totalorder %s24, 3
      %p127 = scmp.ne.s32.totalorder %s122, %s124
      %p128 = scmp.eq.s32.totalorder %s24, 0
      %p129 = por %p127, %p128
      %p130 = scmp.ne.s32.totalorder %s122, %s124
      %p131 = scmp.eq.s32.totalorder %s29, 3
      %p132 = por %p130, %p131
      %p133 = scmp.ne.s32.totalorder %s124, %s125
      %p134 = scmp.eq.s32.totalorder %s29, 0
      %p135 = por %p133, %p134
      %p136 = scmp.ne.s32.totalorder %s124, %s125
      %p137 = scmp.eq.s32.totalorder %s30, 3
      %p138 = por %p136, %p137
      %p140 = scmp.ne.s32.totalorder %s125, %s139
      %p141 = scmp.eq.s32.totalorder %s30, 0
      %p142 = por %p140, %p141
      %s143 = ssub.s32 %s31, %s43
      %p144 = scmp.eq.s32.totalorder %s143, 0
      %s146 = sadd.s32 %s145, 1
      %s147 = scalar_select %p144, %s145, %s146
      %p150 = pneg %p144
      %p151 = scmp.eq.s32.totalorder %s24, 3
      %p152 = por %p150, %p151
      %p153 = scmp.ne.s32.totalorder %s145, %s148
      %p154 = scmp.eq.s32.totalorder %s24, 0
      %p155 = por %p153, %p154
      %p156 = scmp.ne.s32.totalorder %s145, %s148
      %p157 = scmp.eq.s32.totalorder %s29, 3
      %p158 = por %p156, %p157
      %p159 = scmp.ne.s32.totalorder %s148, %s149
      %p160 = scmp.eq.s32.totalorder %s29, 0
      %p161 = por %p159, %p160
      %p162 = scmp.ne.s32.totalorder %s148, %s149
      %p163 = scmp.eq.s32.totalorder %s30, 3
      %p164 = por %p162, %p163
      %p166 = scmp.ne.s32.totalorder %s149, %s165
      %p167 = scmp.eq.s32.totalorder %s30, 0
      %p168 = por %p166, %p167
      %p169 = scmp.le.s32.totalorder 1, %s24
      %p170 = scmp.lt.s32.totalorder %s24, 5
      %p171 = pnand %p169, %p170
      %p172 = pneg %p171
      // Predicated region
      $region9: #{_mpnn_pallas_call.1} parent=5 // pred_check
        _
      $region10: #{_mpnn_pallas_call.1} parent=5 // pred_check_branch
        %174 = sbr.rel (%p171) target = $region12
      $region11: #{_mpnn_pallas_call.1} parent=5 // pred_region
        %s175 = ssub.s32 %s24, 1
        // Predicated region
        $region13: #{_mpnn_pallas_call.1} parent=11 // pred_check
          %p176 = pneg %p135
        $region14: #{_mpnn_pallas_call.1} parent=11 // pred_check_branch
          %178 = sbr.rel (%p176) target = $region16
        $region15: #{_mpnn_pallas_call.1} parent=11 // pred_region
          _
        $region16: #{_mpnn_pallas_call.1} parent=11 // pred_fallthru
          _
      $region12: #{_mpnn_pallas_call.1} parent=5 // pred_fallthru
        _
      %p179 = scmp.lt.s32.totalorder %s24, 4
      // Predicated region
      $region17: #{_mpnn_pallas_call.1} parent=5 // pred_check
        %p180 = pneg %p179
      $region18: #{_mpnn_pallas_call.1} parent=5 // pred_check_branch
        %182 = sbr.rel (%p180) target = $region20
      $region19: #{_mpnn_pallas_call.1} parent=5 // pred_region
        // Predicated region
        $region21: #{_mpnn_pallas_call.1} parent=19 // pred_check
          %p183 = pneg %p56
        $region22: #{_mpnn_pallas_call.1} parent=19 // pred_check_branch
          %185 = sbr.rel (%p183) target = $region24
        $region23: #{_mpnn_pallas_call.1} parent=19 // pred_region
          %s186 = sand.u32 %s46, 1
          %s187 = scalar_lea.sflag [#allocation6], %s186
          %s188 = sand.u32 %s46, 1
          %s189 = smul.addr %s188, 64
          %s190 = scalar_lea.vmem [#allocation5], %s189
          %s192 = ssub.s32 1024, 1024
          %193 = vsyncadd %s187, %s192
          %s194 = smul.addr %s31, 16
          %s195 = smul.addr %s194, 64
          %s196 = scalar_lea.hbm %s1, %s195
          %s197 = sshll.u32 %s190, 4
          %s198 = int_to_ptr.vmem [resolvable:$true] %s197
          %203 = dma.hbm_to_vmem [thread:$0]  %s196, 1024, %s198, %s187, 64, 64, 4
        $region24: #{_mpnn_pallas_call.1} parent=19 // pred_fallthru
          _
        // Predicated region
        $region25: #{_mpnn_pallas_call.1} parent=19 // pred_check
          %p204 = pneg %p82
        $region26: #{_mpnn_pallas_call.1} parent=19 // pred_check_branch
          %206 = sbr.rel (%p204) target = $region28
        $region27: #{_mpnn_pallas_call.1} parent=19 // pred_region
          %s207 = sand.u32 %s24, 1
          %s208 = scalar_lea.sflag [#allocation9], %s207
          %s209 = sand.u32 %s72, 1
          %s210 = smul.addr %s209, 128
          %s211 = scalar_lea.vmem [#allocation8], %s210
          %s213 = ssub.s32 2048, 2048
          %214 = vsyncadd %s208, %s213
          %s215 = smul.addr %s31, 16
          %s216 = smul.addr %s215, 128
          %s217 = scalar_lea.hbm %s2, %s216
          %s218 = sshll.u32 %s211, 4
          %s219 = int_to_ptr.vmem [resolvable:$true] %s218
          %224 = dma.hbm_to_vmem [thread:$0]  %s217, 2048, %s219, %s208, 128, 128, 8
        $region28: #{_mpnn_pallas_call.1} parent=19 // pred_fallthru
          _
        // Predicated region
        $region29: #{_mpnn_pallas_call.1} parent=19 // pred_check
          %p225 = pneg %p108
        $region30: #{_mpnn_pallas_call.1} parent=19 // pred_check_branch
          %227 = sbr.rel (%p225) target = $region32
        $region31: #{_mpnn_pallas_call.1} parent=19 // pred_region
          %s228 = sand.u32 %s24, 1
          %s229 = scalar_lea.sflag [#allocation9], %s228
          %s230 = sand.u32 %s98, 1
          %s231 = smul.addr %s230, 64
          %s232 = scalar_lea.vmem [#allocation10], %s231
          %s234 = ssub.s32 1024, 1024
          %235 = vsyncadd %s229, %s234
          %s236 = smul.addr %s32, 16
          %s237 = smul.addr %s236, 64
          %s238 = scalar_lea.hbm %s3, %s237
          %s239 = sshll.u32 %s232, 4
          %s240 = int_to_ptr.vmem [resolvable:$true] %s239
          %245 = dma.hbm_to_vmem [thread:$0]  %s238, 1024, %s240, %s229, 64, 64, 4
        $region32: #{_mpnn_pallas_call.1} parent=19 // pred_fallthru
          _
      $region20: #{_mpnn_pallas_call.1} parent=5 // pred_fallthru
        _
      %p246 = scmp.le.s32.totalorder 1, %s24
      %p247 = scmp.lt.s32.totalorder %s24, 5
      %p248 = pnand %p246, %p247
      %p249 = pneg %p248
      // Predicated region
      $region33: #{_mpnn_pallas_call.1} parent=5 // pred_check
        _
      $region34: #{_mpnn_pallas_call.1} parent=5 // pred_check_branch
        %251 = sbr.rel (%p248) target = $region36
      $region35: #{_mpnn_pallas_call.1} parent=5 // pred_region
        %s252 = ssub.s32 %s24, 1
        %s253 = sand.u32 %s49, 1
        %s254 = scalar_lea.sflag [#allocation6], %s253
        %s255 = sand.u32 %s49, 1
        %s256 = smul.addr %s255, 64
        %s257 = scalar_lea.vmem [#allocation5], %s256
        // Predicated region
        $region37: #{_mpnn_pallas_call.1} parent=35 // pred_check
          %p258 = pneg %p62
        $region38: #{_mpnn_pallas_call.1} parent=35 // pred_check_branch
          %260 = sbr.rel (%p258) target = $region40
        $region39: #{_mpnn_pallas_call.1} parent=35 // pred_region
          %261 = dma.done %s254, 1024
        $region40: #{_mpnn_pallas_call.1} parent=35 // pred_fallthru
          _
        %s262 = sand.u32 %s29, 1
        %s263 = scalar_lea.sflag [#allocation9], %s262
        %s264 = sand.u32 %s75, 1
        %s265 = smul.addr %s264, 128
        %s266 = scalar_lea.vmem [#allocation8], %s265
        // Predicated region
        $region41: #{_mpnn_pallas_call.1} parent=35 // pred_check
          %p267 = pneg %p88
        $region42: #{_mpnn_pallas_call.1} parent=35 // pred_check_branch
          %269 = sbr.rel (%p267) target = $region44
        $region43: #{_mpnn_pallas_call.1} parent=35 // pred_region
          %270 = dma.done %s263, 2048
        $region44: #{_mpnn_pallas_call.1} parent=35 // pred_fallthru
          _
        %s271 = sand.u32 %s29, 1
        %s272 = scalar_lea.sflag [#allocation9], %s271
        %s273 = sand.u32 %s101, 1
        %s274 = smul.addr %s273, 64
        %s275 = scalar_lea.vmem [#allocation10], %s274
        // Predicated region
        $region45: #{_mpnn_pallas_call.1} parent=35 // pred_check
          %p276 = pneg %p114
        $region46: #{_mpnn_pallas_call.1} parent=35 // pred_check_branch
          %278 = sbr.rel (%p276) target = $region48
        $region47: #{_mpnn_pallas_call.1} parent=35 // pred_region
          %279 = dma.done %s272, 1024
        $region48: #{_mpnn_pallas_call.1} parent=35 // pred_fallthru
          _
        %s280 = sand.u32 %s49, 1
        %s281 = scalar_lea.sflag [#allocation6], %s280
        %s282 = sand.u32 %s49, 1
        %s283 = smul.addr %s282, 64
        %s284 = scalar_lea.vmem [#allocation5], %s283
        %p285 = pneg %p62
        %p286 = pneg %p59
        %s287 = sand.u32 %s29, 1
        %s288 = scalar_lea.sflag [#allocation9], %s287
        %s289 = sand.u32 %s75, 1
        %s290 = smul.addr %s289, 128
        %s291 = scalar_lea.vmem [#allocation8], %s290
        %p292 = pneg %p88
        %p293 = pneg %p85
        %s294 = sand.u32 %s29, 1
        %s295 = scalar_lea.sflag [#allocation9], %s294
        %s296 = sand.u32 %s101, 1
        %s297 = smul.addr %s296, 64
        %s298 = scalar_lea.vmem [#allocation10], %s297
        %p299 = pneg %p114
        %p300 = pneg %p111
        %p301 = pneg %p135
        %p302 = pneg %p132
        %p303 = pneg %p161
        %p304 = pneg %p158
        %s305 = sand.u32 %s148, 1
        %s306 = scalar_lea.sflag [#allocation7], %s305
        %s307 = sand.u32 %s148, 1
        %s308 = smul.addr %s307, 8
        %s309 = scalar_lea.vmem [#allocation11], %s308
        %p311 = scmp.eq.s32.totalorder %s34, 0
        // Predicated region
        $region49: #{_mpnn_pallas_call.1} parent=35 // pred_check
          %p312 = pneg %p311
        $region50: #{_mpnn_pallas_call.1} parent=35 // pred_check_branch
          %314 = sbr.rel (%p312) target = $region52
        $region51: #{_mpnn_pallas_call.1} parent=35 // pred_region
          %v315 = vld [vmem:[%s266] sm:$0xff]
          %v316 = vld [vmem:[%s266 + $0x8] sm:$0xff]
          %v317 = vld [vmem:[%s266 + $0x10] sm:$0xff]
          %v318 = vld [vmem:[%s266 + $0x18] sm:$0xff]
          %v319 = vld [vmem:[%s266 + $0x20] sm:$0xff]
          %v320 = vld [vmem:[%s266 + $0x28] sm:$0xff]
          %v321 = vld [vmem:[%s266 + $0x30] sm:$0xff]
          %v322 = vld [vmem:[%s266 + $0x38] sm:$0xff]
          %v323 = vld [vmem:[%s266 + $0x40] sm:$0xff]
          %v324 = vld [vmem:[%s266 + $0x48] sm:$0xff]
          %v325 = vld [vmem:[%s266 + $0x50] sm:$0xff]
          %v326 = vld [vmem:[%s266 + $0x58] sm:$0xff]
          %v327 = vld [vmem:[%s266 + $0x60] sm:$0xff]
          %v328 = vld [vmem:[%s266 + $0x68] sm:$0xff]
          %v329 = vld [vmem:[%s266 + $0x70] sm:$0xff]
          %v330 = vld [vmem:[%s266 + $0x78] sm:$0xff]
          %331 = vst [vmem:[#allocation2] sm:$0xff] %v315
          %332 = vst [vmem:[#allocation2 + $0x8] sm:$0xff] %v316
          %333 = vst [vmem:[#allocation2 + $0x10] sm:$0xff] %v317
          %334 = vst [vmem:[#allocation2 + $0x18] sm:$0xff] %v318
          %335 = vst [vmem:[#allocation2 + $0x20] sm:$0xff] %v319
          %336 = vst [vmem:[#allocation2 + $0x28] sm:$0xff] %v320
          %337 = vst [vmem:[#allocation2 + $0x30] sm:$0xff] %v321
          %338 = vst [vmem:[#allocation2 + $0x38] sm:$0xff] %v322
          %339 = vst [vmem:[#allocation2 + $0x40] sm:$0xff] %v323
          %340 = vst [vmem:[#allocation2 + $0x48] sm:$0xff] %v324
          %341 = vst [vmem:[#allocation2 + $0x50] sm:$0xff] %v325
          %342 = vst [vmem:[#allocation2 + $0x58] sm:$0xff] %v326
          %343 = vst [vmem:[#allocation2 + $0x60] sm:$0xff] %v327
          %344 = vst [vmem:[#allocation2 + $0x68] sm:$0xff] %v328
          %345 = vst [vmem:[#allocation2 + $0x70] sm:$0xff] %v329
          %346 = vst [vmem:[#allocation2 + $0x78] sm:$0xff] %v330
        $region52: #{_mpnn_pallas_call.1} parent=35 // pred_fallthru
          _
        %v347 = vld [vmem:[#allocation2] sm:$0xff]
        %v348 = vld [vmem:[#allocation2 + $0x8] sm:$0xff]
        %v349 = vld [vmem:[#allocation2 + $0x10] sm:$0xff]
        %v350 = vld [vmem:[#allocation2 + $0x18] sm:$0xff]
        %v351 = vld [vmem:[#allocation2 + $0x20] sm:$0xff]
        %v352 = vld [vmem:[#allocation2 + $0x28] sm:$0xff]
        %v353 = vld [vmem:[#allocation2 + $0x30] sm:$0xff]
        %v354 = vld [vmem:[#allocation2 + $0x38] sm:$0xff]
        %v355 = vld [vmem:[#allocation2 + $0x40] sm:$0xff]
        %v356 = vld [vmem:[#allocation2 + $0x48] sm:$0xff]
        %v357 = vld [vmem:[#allocation2 + $0x50] sm:$0xff]
        %v358 = vld [vmem:[#allocation2 + $0x58] sm:$0xff]
        %v359 = vld [vmem:[#allocation2 + $0x60] sm:$0xff]
        %v360 = vld [vmem:[#allocation2 + $0x68] sm:$0xff]
        %v361 = vld [vmem:[#allocation2 + $0x70] sm:$0xff]
        %v362 = vld [vmem:[#allocation2 + $0x78] sm:$0xff]
        %v363 = vpack.c.bf16 %v348, %v347
        %v364 = vpack.c.bf16 %v350, %v349
        %v365 = vpack.c.bf16 %v352, %v351
        %v366 = vpack.c.bf16 %v354, %v353
        %v367 = vpack.c.bf16 %v356, %v355
        %v368 = vpack.c.bf16 %v358, %v357
        %v369 = vpack.c.bf16 %v360, %v359
        %v370 = vpack.c.bf16 %v362, %v361
        %v371 = vld [vmem:[%s275] sm:$0xf]
        %v372 = vld [vmem:[%s275 + $0x4] sm:$0xf]
        %v373 = vld [vmem:[%s275 + $0x8] sm:$0xf]
        %v374 = vld [vmem:[%s275 + $0xc] sm:$0xf]
        %v375 = vld [vmem:[%s275 + $0x10] sm:$0xf]
        %v376 = vld [vmem:[%s275 + $0x14] sm:$0xf]
        %v377 = vld [vmem:[%s275 + $0x18] sm:$0xf]
        %v378 = vld [vmem:[%s275 + $0x1c] sm:$0xf]
        %v379 = vld [vmem:[%s275 + $0x20] sm:$0xf]
        %v380 = vld [vmem:[%s275 + $0x24] sm:$0xf]
        %v381 = vld [vmem:[%s275 + $0x28] sm:$0xf]
        %v382 = vld [vmem:[%s275 + $0x2c] sm:$0xf]
        %v383 = vld [vmem:[%s275 + $0x30] sm:$0xf]
        %v384 = vld [vmem:[%s275 + $0x34] sm:$0xf]
        %v385 = vld [vmem:[%s275 + $0x38] sm:$0xf]
        %v386 = vld [vmem:[%s275 + $0x3c] sm:$0xf]
        %s387 = scalar_lea.vmem %s4, %s34
        %v388 = vld [vmem:[%s387] sm:$0x1]
        %v389 = vlaneseq
        %v390 = vshrl.u32 %v389, 7
        %v391 = vsub.s32 0, %v390
        %v392 = vrot.slane %v388, %v391
        %v409 = vunpack.c.l.b16 %v371
        %v410 = vunpack.c.l.b16 %v372
        %v411 = vunpack.c.l.b16 %v373
        %v412 = vunpack.c.l.b16 %v374
        %v413 = vunpack.c.l.b16 %v375
        %v414 = vunpack.c.l.b16 %v376
        %v415 = vunpack.c.l.b16 %v377
        %v416 = vunpack.c.l.b16 %v378
        %v417 = vunpack.c.l.b16 %v379
        %v418 = vunpack.c.l.b16 %v380
        %v419 = vunpack.c.l.b16 %v381
        %v420 = vunpack.c.l.b16 %v382
        %v421 = vunpack.c.l.b16 %v383
        %v422 = vunpack.c.l.b16 %v384
        %v423 = vunpack.c.l.b16 %v385
        %v424 = vunpack.c.l.b16 %v386
        %v425 = vpack.c.b16 %v410, %v409
        %v426 = vpack.c.b16 %v412, %v411
        %v427 = vpack.c.b16 %v414, %v413
        %v428 = vpack.c.b16 %v416, %v415
        %v429 = vpack.c.b16 %v418, %v417
        %v430 = vpack.c.b16 %v420, %v419
        %v431 = vpack.c.b16 %v422, %v421
        %v432 = vpack.c.b16 %v424, %v423
        %441 = vmatprep.subr.bf16.mxu0 0
        %442 = vmatpush1.bf16.msra.mxu0 %v425
        %443 = vmatprep.subr.bf16.mxu0 0
        %444 = vmatpush1.bf16.msra.mxu0 %v426
        %445 = vmatprep.subr.bf16.mxu0 0
        %446 = vmatpush1.bf16.msra.mxu0 %v427
        %447 = vmatprep.subr.bf16.mxu0 0
        %448 = vmatpush1.bf16.msra.mxu0 %v428
        %449 = vmatprep.subr.bf16.mxu0 0
        %450 = vmatpush1.bf16.msra.mxu0 %v429
        %451 = vmatprep.subr.bf16.mxu0 0
        %452 = vmatpush1.bf16.msra.mxu0 %v430
        %453 = vmatprep.subr.bf16.mxu0 0
        %454 = vmatpush1.bf16.msra.mxu0 %v431
        %455 = vmatprep.subr.bf16.mxu0 0
        %456 = vmatpush1.bf16.msra.mxu0 %v432
        %457 = vmatprep.subr.bf16.mxu0 0
        %458 = vmatpush1.bf16.msra.mxu0 0
        %459 = vmatprep.subr.bf16.mxu0 0
        %460 = vmatpush1.bf16.msra.mxu0 0
        %461 = vmatprep.subr.bf16.mxu0 0
        %462 = vmatpush1.bf16.msra.mxu0 0
        %463 = vmatprep.subr.bf16.mxu0 0
        %464 = vmatpush1.bf16.msra.mxu0 0
        %465 = vmatprep.subr.bf16.mxu0 0
        %466 = vmatpush1.bf16.msra.mxu0 0
        %467 = vmatprep.subr.bf16.mxu0 0
        %468 = vmatpush1.bf16.msra.mxu0 0
        %469 = vmatprep.subr.bf16.mxu0 0
        %470 = vmatpush1.bf16.msra.mxu0 0
        %471 = vmatprep.subr.bf16.mxu0 0
        %472 = vmatpush1.bf16.msra.mxu0 0
        %473 = vmatprep.mubr.bf16.mxu0 0
        %474 = vmatmul.mubr.bf16.gmra.mrb[0].mxu0 %v363
        %v475 = vpop.f32.mrb[0].mxu0
        %v476 = vadd.f32 %v392, %v475
        %v477 = vpop.f32.mrb[0].mxu0
        %v478 = vpop.f32.mrb[0].mxu0
        %v479 = vadd.f32 %v392, %v478
        %v480 = vpop.f32.mrb[0].mxu0
        %481 = vmatprep.mubr.bf16.mxu0 0
        %482 = vmatmul.mubr.bf16.gmra.mrb[0].mxu0 %v364
        %v483 = vpop.f32.mrb[0].mxu0
        %v484 = vadd.f32 %v392, %v483
        %v485 = vpop.f32.mrb[0].mxu0
        %v486 = vpop.f32.mrb[0].mxu0
        %v487 = vadd.f32 %v392, %v486
        %v488 = vpop.f32.mrb[0].mxu0
        %489 = vmatprep.mubr.bf16.mxu0 0
        %490 = vmatmul.mubr.bf16.gmra.mrb[0].mxu0 %v365
        %v491 = vpop.f32.mrb[0].mxu0
        %v492 = vadd.f32 %v392, %v491
        %v493 = vpop.f32.mrb[0].mxu0
        %v494 = vpop.f32.mrb[0].mxu0
        %v495 = vadd.f32 %v392, %v494
        %v496 = vpop.f32.mrb[0].mxu0
        %497 = vmatprep.mubr.bf16.mxu0 0
        %498 = vmatmul.mubr.bf16.gmra.mrb[0].mxu0 %v366
        %v499 = vpop.f32.mrb[0].mxu0
        %v500 = vadd.f32 %v392, %v499
        %v501 = vpop.f32.mrb[0].mxu0
        %v502 = vpop.f32.mrb[0].mxu0
        %v503 = vadd.f32 %v392, %v502
        %v504 = vpop.f32.mrb[0].mxu0
        %505 = vmatprep.mubr.bf16.mxu0 0
        %506 = vmatmul.mubr.bf16.gmra.mrb[0].mxu0 %v367
        %v507 = vpop.f32.mrb[0].mxu0
        %v508 = vadd.f32 %v392, %v507
        %v509 = vpop.f32.mrb[0].mxu0
        %v510 = vpop.f32.mrb[0].mxu0
        %v511 = vadd.f32 %v392, %v510
        %v512 = vpop.f32.mrb[0].mxu0
        %513 = vmatprep.mubr.bf16.mxu0 0
        %514 = vmatmul.mubr.bf16.gmra.mrb[0].mxu0 %v368
        %v515 = vpop.f32.mrb[0].mxu0
        %v516 = vadd.f32 %v392, %v515
        %v517 = vpop.f32.mrb[0].mxu0
        %v518 = vpop.f32.mrb[0].mxu0
        %v519 = vadd.f32 %v392, %v518
        %v520 = vpop.f32.mrb[0].mxu0
        %521 = vmatprep.mubr.bf16.mxu0 0
        %522 = vmatmul.mubr.bf16.gmra.mrb[0].mxu0 %v369
        %v523 = vpop.f32.mrb[0].mxu0
        %v524 = vadd.f32 %v392, %v523
        %v525 = vpop.f32.mrb[0].mxu0
        %v526 = vpop.f32.mrb[0].mxu0
        %v527 = vadd.f32 %v392, %v526
        %v528 = vpop.f32.mrb[0].mxu0
        %529 = vmatprep.mubr.bf16.mxu0 0
        %530 = vmatmul.mubr.bf16.gmra.mrb[0].mxu0 %v370
        %v531 = vpop.f32.mrb[0].mxu0
        %v532 = vadd.f32 %v392, %v531
        %v533 = vpop.f32.mrb[0].mxu0
        %v534 = vpop.f32.mrb[0].mxu0
        %v535 = vadd.f32 %v392, %v534
        %v536 = vpop.f32.mrb[0].mxu0
        %537 = vdwg.mxu0
        %v538 = vmax.f32 %v476, 0.0
        %v539 = vmax.f32 %v479, 0.0
        %v540 = vmax.f32 %v484, 0.0
        %v541 = vmax.f32 %v487, 0.0
        %v542 = vmax.f32 %v492, 0.0
        %v543 = vmax.f32 %v495, 0.0
        %v544 = vmax.f32 %v500, 0.0
        %v545 = vmax.f32 %v503, 0.0
        %v546 = vmax.f32 %v508, 0.0
        %v547 = vmax.f32 %v511, 0.0
        %v548 = vmax.f32 %v516, 0.0
        %v549 = vmax.f32 %v519, 0.0
        %v550 = vmax.f32 %v524, 0.0
        %v551 = vmax.f32 %v527, 0.0
        %v552 = vmax.f32 %v532, 0.0
        %v553 = vmax.f32 %v535, 0.0
        %v554 = vld [vmem:[%s257] sm:$0xf]
        %v555 = vld [vmem:[%s257 + $0x4] sm:$0xf]
        %v556 = vld [vmem:[%s257 + $0x8] sm:$0xf]
        %v557 = vld [vmem:[%s257 + $0xc] sm:$0xf]
        %v558 = vld [vmem:[%s257 + $0x10] sm:$0xf]
        %v559 = vld [vmem:[%s257 + $0x14] sm:$0xf]
        %v560 = vld [vmem:[%s257 + $0x18] sm:$0xf]
        %v561 = vld [vmem:[%s257 + $0x1c] sm:$0xf]
        %v562 = vld [vmem:[%s257 + $0x20] sm:$0xf]
        %v563 = vld [vmem:[%s257 + $0x24] sm:$0xf]
        %v564 = vld [vmem:[%s257 + $0x28] sm:$0xf]
        %v565 = vld [vmem:[%s257 + $0x2c] sm:$0xf]
        %v566 = vld [vmem:[%s257 + $0x30] sm:$0xf]
        %v567 = vld [vmem:[%s257 + $0x34] sm:$0xf]
        %v568 = vld [vmem:[%s257 + $0x38] sm:$0xf]
        %v569 = vld [vmem:[%s257 + $0x3c] sm:$0xf]
        %v570 = vpack.c.bf16 %v539, %v538
        %v571 = vpack.c.bf16 %v541, %v540
        %v572 = vpack.c.bf16 %v543, %v542
        %v573 = vpack.c.bf16 %v545, %v544
        %v574 = vpack.c.bf16 %v547, %v546
        %v575 = vpack.c.bf16 %v549, %v548
        %v576 = vpack.c.bf16 %v551, %v550
        %v577 = vpack.c.bf16 %v553, %v552
        %v594 = vunpack.c.l.b16 %v554
        %v595 = vunpack.c.l.b16 %v555
        %v596 = vunpack.c.l.b16 %v556
        %v597 = vunpack.c.l.b16 %v557
        %v598 = vunpack.c.l.b16 %v558
        %v599 = vunpack.c.l.b16 %v559
        %v600 = vunpack.c.l.b16 %v560
        %v601 = vunpack.c.l.b16 %v561
        %v602 = vunpack.c.l.b16 %v562
        %v603 = vunpack.c.l.b16 %v563
        %v604 = vunpack.c.l.b16 %v564
        %v605 = vunpack.c.l.b16 %v565
        %v606 = vunpack.c.l.b16 %v566
        %v607 = vunpack.c.l.b16 %v567
        %v608 = vunpack.c.l.b16 %v568
        %v609 = vunpack.c.l.b16 %v569
        %v610 = vpack.c.b16 %v595, %v594
        %v611 = vpack.c.b16 %v597, %v596
        %v612 = vpack.c.b16 %v599, %v598
        %v613 = vpack.c.b16 %v601, %v600
        %v614 = vpack.c.b16 %v603, %v602
        %v615 = vpack.c.b16 %v605, %v604
        %v616 = vpack.c.b16 %v607, %v606
        %v617 = vpack.c.b16 %v609, %v608
        %626 = vmatprep.subr.bf16.mxu0 0
        %627 = vmatpush1.bf16.msra.mxu0 %v570
        %628 = vmatprep.subr.bf16.mxu0 0
        %629 = vmatpush1.bf16.msra.mxu0 %v571
        %630 = vmatprep.subr.bf16.mxu0 0
        %631 = vmatpush1.bf16.msra.mxu0 %v572
        %632 = vmatprep.subr.bf16.mxu0 0
        %633 = vmatpush1.bf16.msra.mxu0 %v573
        %634 = vmatprep.subr.bf16.mxu0 0
        %635 = vmatpush1.bf16.msra.mxu0 %v574
        %636 = vmatprep.subr.bf16.mxu0 0
        %637 = vmatpush1.bf16.msra.mxu0 %v575
        %638 = vmatprep.subr.bf16.mxu0 0
        %639 = vmatpush1.bf16.msra.mxu0 %v576
        %640 = vmatprep.subr.bf16.mxu0 0
        %641 = vmatpush1.bf16.msra.mxu0 %v577
        %642 = vmatprep.subr.bf16.mxu0 0
        %643 = vmatpush1.bf16.msra.mxu0 0
        %644 = vmatprep.subr.bf16.mxu0 0
        %645 = vmatpush1.bf16.msra.mxu0 0
        %646 = vmatprep.subr.bf16.mxu0 0
        %647 = vmatpush1.bf16.msra.mxu0 0
        %648 = vmatprep.subr.bf16.mxu0 0
        %649 = vmatpush1.bf16.msra.mxu0 0
        %650 = vmatprep.subr.bf16.mxu0 0
        %651 = vmatpush1.bf16.msra.mxu0 0
        %652 = vmatprep.subr.bf16.mxu0 0
        %653 = vmatpush1.bf16.msra.mxu0 0
        %654 = vmatprep.subr.bf16.mxu0 0
        %655 = vmatpush1.bf16.msra.mxu0 0
        %656 = vmatprep.subr.bf16.mxu0 0
        %657 = vmatpush1.bf16.msra.mxu0 0
        %658 = vmatprep.mubr.bf16.mxu0 0
        %659 = vmatmul.mubr.bf16.gmra.mrb[0].mxu0 %v610
        %v660 = vpop.f32.mrb[0].mxu0
        %v661 = vadd.f32 0.0, %v660
        %v662 = vpop.f32.mrb[0].mxu0
        %v663 = vpop.f32.mrb[0].mxu0
        %v664 = vadd.f32 0.0, %v663
        %v665 = vpop.f32.mrb[0].mxu0
        %666 = vmatprep.mubr.bf16.mxu0 0
        %667 = vmatmul.mubr.bf16.gmra.mrb[0].mxu0 %v611
        %v668 = vpop.f32.mrb[0].mxu0
        %v669 = vadd.f32 0.0, %v668
        %v670 = vpop.f32.mrb[0].mxu0
        %v671 = vpop.f32.mrb[0].mxu0
        %v672 = vadd.f32 0.0, %v671
        %v673 = vpop.f32.mrb[0].mxu0
        %674 = vmatprep.mubr.bf16.mxu0 0
        %675 = vmatmul.mubr.bf16.gmra.mrb[0].mxu0 %v612
        %v676 = vpop.f32.mrb[0].mxu0
        %v677 = vadd.f32 0.0, %v676
        %v678 = vpop.f32.mrb[0].mxu0
        %v679 = vpop.f32.mrb[0].mxu0
        %v680 = vadd.f32 0.0, %v679
        %v681 = vpop.f32.mrb[0].mxu0
        %682 = vmatprep.mubr.bf16.mxu0 0
        %683 = vmatmul.mubr.bf16.gmra.mrb[0].mxu0 %v613
        %v684 = vpop.f32.mrb[0].mxu0
        %v685 = vadd.f32 0.0, %v684
        %v686 = vpop.f32.mrb[0].mxu0
        %v687 = vpop.f32.mrb[0].mxu0
        %v688 = vadd.f32 0.0, %v687
        %v689 = vpop.f32.mrb[0].mxu0
        %690 = vmatprep.mubr.bf16.mxu0 0
        %691 = vmatmul.mubr.bf16.gmra.mrb[0].mxu0 %v614
        %v692 = vpop.f32.mrb[0].mxu0
        %v693 = vadd.f32 0.0, %v692
        %v694 = vpop.f32.mrb[0].mxu0
        %v695 = vpop.f32.mrb[0].mxu0
        %v696 = vadd.f32 0.0, %v695
        %v697 = vpop.f32.mrb[0].mxu0
        %698 = vmatprep.mubr.bf16.mxu0 0
        %699 = vmatmul.mubr.bf16.gmra.mrb[0].mxu0 %v615
        %v700 = vpop.f32.mrb[0].mxu0
        %v701 = vadd.f32 0.0, %v700
        %v702 = vpop.f32.mrb[0].mxu0
        %v703 = vpop.f32.mrb[0].mxu0
        %v704 = vadd.f32 0.0, %v703
        %v705 = vpop.f32.mrb[0].mxu0
        %706 = vmatprep.mubr.bf16.mxu0 0
        %707 = vmatmul.mubr.bf16.gmra.mrb[0].mxu0 %v616
        %v708 = vpop.f32.mrb[0].mxu0
        %v709 = vadd.f32 0.0, %v708
        %v710 = vpop.f32.mrb[0].mxu0
        %v711 = vpop.f32.mrb[0].mxu0
        %v712 = vadd.f32 0.0, %v711
        %v713 = vpop.f32.mrb[0].mxu0
        %714 = vmatprep.mubr.bf16.mxu0 0
        %715 = vmatmul.mubr.bf16.gmra.mrb[0].mxu0 %v617
        %v716 = vpop.f32.mrb[0].mxu0
        %v717 = vadd.f32 0.0, %v716
        %v718 = vpop.f32.mrb[0].mxu0
        %v719 = vpop.f32.mrb[0].mxu0
        %v720 = vadd.f32 0.0, %v719
        %v721 = vpop.f32.mrb[0].mxu0
        %722 = vdwg.mxu0
        %v723 = vadd.f32 %v538, %v661
        %v724 = vadd.f32 %v539, %v664
        %v725 = vadd.f32 %v540, %v669
        %v726 = vadd.f32 %v541, %v672
        %v727 = vadd.f32 %v542, %v677
        %v728 = vadd.f32 %v543, %v680
        %v729 = vadd.f32 %v544, %v685
        %v730 = vadd.f32 %v545, %v688
        %v731 = vadd.f32 %v546, %v693
        %v732 = vadd.f32 %v547, %v696
        %v733 = vadd.f32 %v548, %v701
        %v734 = vadd.f32 %v549, %v704
        %v735 = vadd.f32 %v550, %v709
        %v736 = vadd.f32 %v551, %v712
        %v737 = vadd.f32 %v552, %v717
        %v738 = vadd.f32 %v553, %v720
        %739 = vst [vmem:[#allocation2] sm:$0xff] %v723
        %740 = vst [vmem:[#allocation2 + $0x8] sm:$0xff] %v724
        %741 = vst [vmem:[#allocation2 + $0x10] sm:$0xff] %v725
        %742 = vst [vmem:[#allocation2 + $0x18] sm:$0xff] %v726
        %743 = vst [vmem:[#allocation2 + $0x20] sm:$0xff] %v727
        %744 = vst [vmem:[#allocation2 + $0x28] sm:$0xff] %v728
        %745 = vst [vmem:[#allocation2 + $0x30] sm:$0xff] %v729
        %746 = vst [vmem:[#allocation2 + $0x38] sm:$0xff] %v730
        %747 = vst [vmem:[#allocation2 + $0x40] sm:$0xff] %v731
        %748 = vst [vmem:[#allocation2 + $0x48] sm:$0xff] %v732
        %749 = vst [vmem:[#allocation2 + $0x50] sm:$0xff] %v733
        %750 = vst [vmem:[#allocation2 + $0x58] sm:$0xff] %v734
        %751 = vst [vmem:[#allocation2 + $0x60] sm:$0xff] %v735
        %752 = vst [vmem:[#allocation2 + $0x68] sm:$0xff] %v736
        %753 = vst [vmem:[#allocation2 + $0x70] sm:$0xff] %v737
        %754 = vst [vmem:[#allocation2 + $0x78] sm:$0xff] %v738
        %p755 = scmp.eq.s32.totalorder %s34, 1
        // Predicated region
        $region53: #{_mpnn_pallas_call.1} parent=35 // pred_check
          %p756 = pneg %p755
        $region54: #{_mpnn_pallas_call.1} parent=35 // pred_check_branch
          %758 = sbr.rel (%p756) target = $region56
        $region55: #{_mpnn_pallas_call.1} parent=35 // pred_region
          %s759 = sld [smem:[#allocation4 + %s33]]
          %v760 = vlaneseq
          %v761 = vshrl.u32 %v760, 7
          %v762 = vadd.s32 %v761, 8
          %v763 = vadd.s32 %v761, 16
          %v764 = vadd.s32 %v761, 24
          %v765 = vadd.s32 %v761, 32
          %v766 = vadd.s32 %v761, 40
          %v767 = vadd.s32 %v761, 48
          %v768 = vadd.s32 %v761, 56
          %v769 = vadd.s32 %v761, 64
          %v770 = vadd.s32 %v761, 72
          %v771 = vadd.s32 %v761, 80
          %v772 = vadd.s32 %v761, 88
          %v773 = vadd.s32 %v761, 96
          %v774 = vadd.s32 %v761, 104
          %v775 = vadd.s32 %v761, 112
          %v776 = vadd.s32 %v761, 120
          %v777 = vstv %s759
          %vm778 = vcmp.lt.s32.totalorder %v761, %v777
          %vm779 = vcmp.lt.s32.totalorder %v762, %v777
          %vm780 = vcmp.lt.s32.totalorder %v763, %v777
          %vm781 = vcmp.lt.s32.totalorder %v764, %v777
          %vm782 = vcmp.lt.s32.totalorder %v765, %v777
          %vm783 = vcmp.lt.s32.totalorder %v766, %v777
          %vm784 = vcmp.lt.s32.totalorder %v767, %v777
          %vm785 = vcmp.lt.s32.totalorder %v768, %v777
          %vm786 = vcmp.lt.s32.totalorder %v769, %v777
          %vm787 = vcmp.lt.s32.totalorder %v770, %v777
          %vm788 = vcmp.lt.s32.totalorder %v771, %v777
          %vm789 = vcmp.lt.s32.totalorder %v772, %v777
          %vm790 = vcmp.lt.s32.totalorder %v773, %v777
          %vm791 = vcmp.lt.s32.totalorder %v774, %v777
          %vm792 = vcmp.lt.s32.totalorder %v775, %v777
          %vm793 = vcmp.lt.s32.totalorder %v776, %v777
          %v794 = vsel %vm778, %v723, 0.0
          %v795 = vsel %vm779, %v724, 0.0
          %v796 = vsel %vm780, %v725, 0.0
          %v797 = vsel %vm781, %v726, 0.0
          %v798 = vsel %vm782, %v727, 0.0
          %v799 = vsel %vm783, %v728, 0.0
          %v800 = vsel %vm784, %v729, 0.0
          %v801 = vsel %vm785, %v730, 0.0
          %v802 = vsel %vm786, %v731, 0.0
          %v803 = vsel %vm787, %v732, 0.0
          %v804 = vsel %vm788, %v733, 0.0
          %v805 = vsel %vm789, %v734, 0.0
          %v806 = vsel %vm790, %v735, 0.0
          %v807 = vsel %vm791, %v736, 0.0
          %v808 = vsel %vm792, %v737, 0.0
          %v809 = vsel %vm793, %v738, 0.0
          %v810 = vadd.f32 %v794, %v795
          %v811 = vadd.f32 %v810, %v796
          %v812 = vadd.f32 %v811, %v797
          %v813 = vadd.f32 %v812, %v798
          %v814 = vadd.f32 %v813, %v799
          %v815 = vadd.f32 %v814, %v800
          %v816 = vadd.f32 %v815, %v801
          %v817 = vadd.f32 %v816, %v802
          %v818 = vadd.f32 %v817, %v803
          %v819 = vadd.f32 %v818, %v804
          %v820 = vadd.f32 %v819, %v805
          %v821 = vadd.f32 %v820, %v806
          %v822 = vadd.f32 %v821, %v807
          %v823 = vadd.f32 %v822, %v808
          %v824 = vadd.f32 %v823, %v809
          %v825 = vrot.slane %v824, 4
          %v826 = vadd.f32 %v824, %v825
          %v827 = vrot.slane %v826, 2
          %v828 = vadd.f32 %v826, %v827
          %v829 = vrot.slane %v828, 1
          %v830 = vadd.f32 %v828, %v829
          %831 = vst [vmem:[%s309] sm:$0xff] %v830
        $region56: #{_mpnn_pallas_call.1} parent=35 // pred_fallthru
          _
        %s832 = sand.u32 %s148, 1
        %s833 = scalar_lea.sflag [#allocation7], %s832
        %s834 = sand.u32 %s148, 1
        %s835 = smul.addr %s834, 8
        %s836 = scalar_lea.vmem [#allocation11], %s835
        // Predicated region
        $region57: #{_mpnn_pallas_call.1} parent=35 // pred_check
          %p837 = pneg %p158
        $region58: #{_mpnn_pallas_call.1} parent=35 // pred_check_branch
          %839 = sbr.rel (%p837) target = $region60
        $region59: #{_mpnn_pallas_call.1} parent=35 // pred_region
          %s841 = ssub.s32 128, 128
          %842 = vsyncadd %s833, %s841
          %s843 = smul.addr %s33, 128
          %s844 = scalar_lea.hbm %s5, %s843
          %s846 = sshll.u32 %s836, 4
          %s847 = int_to_ptr.vmem [resolvable:$true] %s846
          %849 = dma.vmem_to_hbm [thread:$0]  %s847, 128, %s844, %s833
        $region60: #{_mpnn_pallas_call.1} parent=35 // pred_fallthru
          _
      $region36: #{_mpnn_pallas_call.1} parent=5 // pred_fallthru
        _
      %p850 = scmp.le.s32.totalorder 2, %s24
      // Predicated region
      $region61: #{_mpnn_pallas_call.1} parent=5 // pred_check
        %p851 = pneg %p850
      $region62: #{_mpnn_pallas_call.1} parent=5 // pred_check_branch
        %853 = sbr.rel (%p851) target = $region64
      $region63: #{_mpnn_pallas_call.1} parent=5 // pred_region
        %s854 = ssub.s32 %s24, 2
        // Predicated region
        $region65: #{_mpnn_pallas_call.1} parent=63 // pred_check
          %p855 = pneg %p164
        $region66: #{_mpnn_pallas_call.1} parent=63 // pred_check_branch
          %857 = sbr.rel (%p855) target = $region68
        $region67: #{_mpnn_pallas_call.1} parent=63 // pred_region
          %s858 = sand.u32 %s149, 1
          %s859 = scalar_lea.sflag [#allocation7], %s858
          %s860 = sand.u32 %s149, 1
          %s861 = smul.addr %s860, 8
          %s862 = scalar_lea.vmem [#allocation11], %s861
          %863 = dma.done %s859, 128
        $region68: #{_mpnn_pallas_call.1} parent=63 // pred_fallthru
          _
      $region64: #{_mpnn_pallas_call.1} parent=5 // pred_fallthru
        _
    $region6: #{_mpnn_pallas_call.1} parent=1 // loop_footer
      %s28 = sadd.s32 1, %s24
    $region7: #{_mpnn_pallas_call.1} parent=1 // loop_footer_branch
      %23 = sbr.rel target = $region3
    $region8: #{_mpnn_pallas_call.1} parent=1 // loop_exit
      _
    %864 = vsyncpa [#allocation6], 1
    %s865 = scalar_lea.sflag [#allocation6], 1
    %866 = vsyncpa %s865, 1
    %867 = vsyncpa [#allocation9], 1
    %s868 = scalar_lea.sflag [#allocation9], 1
    %869 = vsyncpa %s868, 1
    %870 = vsyncpa [#allocation7], 1
    %s871 = scalar_lea.sflag [#allocation7], 1
    %872 = vsyncpa %s871, 1

</llo_original>
